<compile_context>
chip_gen: v7x
topology: tpu7x:2x2x1
jax: 0.10.0
libtpu: 0.0.40
codegen_flags: <defaults>
</compile_context>

<pallas_src>
import jax
import jax.numpy as jnp
from jax.experimental import pallas as pl
from jax.experimental.pallas import tpu as pltpu


def _round_up(n: int, m: int) -> int:
    return ((n + m - 1) // m) * m


# ---------------------------------------------------------------------------
# Kernel
# ---------------------------------------------------------------------------
def conba_kernel(
    x_ref, prev_ref,          # (TB, Dp) bf16 activation tiles
    w_a_ref, w_b_ref,         # (Dp, Dp)  bf16: A^T, B^T
    w_sel_ref,                # (Dp, Dp)  bf16: selective_fc^T
    w_cf_ref,                 # (Dp, Dp)  bf16: C^T @ fc2^T pre-composed
    vec_ref,                  # (8, Dp)   f32: rows 0..3 = sel_b, ctrl, fb, fc2_b
    out_ref, state_ref,       # (TB, Dp)  bf16 outputs
):
    # Load activations once; single f32 convert of x for elementwise math.
    x_bf = x_ref[...]
    prev_bf = prev_ref[...]
    x_f32 = x_bf.astype(jnp.float32)

    vec = vec_ref[...]                      # (8, Dp) f32
    sel_b = vec[0:1, :]
    ctrl = vec[1:2, :]
    fb = vec[2:3, :]
    fc2_b = vec[3:4, :]

    # state = A(prev) + B(x): two MXU dots, f32 accumulation, no concat.
    state = (
        jnp.dot(prev_bf, w_a_ref[...], preferred_element_type=jnp.float32)
        + jnp.dot(x_bf, w_b_ref[...], preferred_element_type=jnp.float32)
    )

    # selective = SiLU(selective_fc(x)) * x   (single tanh on the EUP)
    sel_pre = (
        jnp.dot(x_bf, w_sel_ref[...], preferred_element_type=jnp.float32)
        + sel_b
    )
    silu = 0.5 * sel_pre * (1.0 + jnp.tanh(0.5 * sel_pre))
    selective = silu * x_f32

    # adjusted = selective * control_weight + state * feedback_weight
    adjusted = selective * ctrl + state * fb

    # output = fc2(C(adjusted)) with the two weights pre-composed into W_cf.
    out = (
        jnp.dot(adjusted.astype(jnp.bfloat16), w_cf_ref[...],
                preferred_element_type=jnp.float32)
        + fc2_b
    )

    out_ref[...] = out.astype(out_ref.dtype)
    state_ref[...] = state.astype(state_ref.dtype)


# ---------------------------------------------------------------------------
# Host-side parameter preparation (done once, outside the step)
# ---------------------------------------------------------------------------
def prepare_params(params, input_dim):
    """Pre-transpose, pre-compose C∘fc2, zero-pad to lane-dense Dp, cast bf16."""
    D = input_dim
    Dp = _round_up(D, 128)

    def pad2(w):  # (D, D) -> (Dp, Dp)
        return jnp.pad(w.astype(jnp.float32), ((0, Dp - D), (0, Dp - D)))

    def pad1(v):  # (D,) -> (Dp,)
        return jnp.pad(v.astype(jnp.float32), (0, Dp - D))

    # Pack the four per-feature vectors into one (8, Dp) f32 block.
    vec = jnp.zeros((8, Dp), jnp.float32)
    vec = vec.at[0].set(pad1(params["sel_b"]))
    vec = vec.at[1].set(pad1(params["control_weight"]))
    vec = vec.at[2].set(pad1(params["feedback_weight"]))
    vec = vec.at[3].set(pad1(params["fc2_b"]))

    return {
        "w_a": pad2(params["A_w"].T).astype(jnp.bfloat16),
        "w_b": pad2(params["B_w"].T).astype(jnp.bfloat16),
        "w_sel": pad2(params["sel_w"].T).astype(jnp.bfloat16),
        "w_cf": pad2(params["C_w"].T @ params["fc2_w"].T).astype(jnp.bfloat16),
        "vec": vec,
    }


def _to_kernel_layout(a, Dp):
    """Cast to bf16, then pad the feature dim to Dp (cast first: smaller pad)."""
    a = a.astype(jnp.bfloat16)
    D = a.shape[-1]
    if D != Dp:
        a = jnp.pad(a, ((0, 0), (0, Dp - D)))
    return a


# ---------------------------------------------------------------------------
# Wrapper
# ---------------------------------------------------------------------------
def conba_layer(x, previous_state, prepped, *, batch_tile=1024,
                return_padded_state=False):
    """ConbaLayer forward.

    Returns (output, state).  `previous_state` may be None, an unpadded
    (B, D) array, or a padded (B, Dp) bf16 array (kernel layout) as returned
    when `return_padded_state=True` — the latter avoids re-pad / re-slice
    HBM passes on recurrent rollouts.
    """
    B, D = x.shape
    Dp = prepped["w_sel"].shape[0]

    # Batch tile: large for pipelining efficiency, but capped at ceil(B/2)
    # (rounded to the 8-sublane granule) so there are >=2 grid steps when B
    # allows it and both v7x TensorCores get work.
    TB = max(8, min(batch_tile, _round_up(pl.cdiv(B, 2), 8)))
    nb = pl.cdiv(B, TB)   # partial last tile handled by Pallas masking

    xp = _to_kernel_layout(x, Dp)
    if previous_state is None:
        pp = jnp.zeros((B, Dp), jnp.bfloat16)
    elif (previous_state.dtype == jnp.bfloat16
          and previous_state.shape == (B, Dp)):
        pp = previous_state                      # already in kernel layout
    else:
        pp = _to_kernel_layout(previous_state, Dp)

    row_spec = pl.BlockSpec((TB, Dp), lambda i: (i, 0))

    # VMEM budgeting: single-buffer the (constant-index) weights and raise the
    # scoped VMEM limit when the resident weight set grows; cap at 64 MiB so
    # the same code path also works on v7x's smaller VMEM.
    weight_bytes = 4 * Dp * Dp * 2 + 8 * Dp * 4
    single_buffer_weights = weight_bytes > (4 << 20)
    act_bytes = 4 * TB * Dp * 2 * 2          # 4 bf16 streams, double-buffered
    tmp_bytes = 8 * TB * Dp * 4              # f32 temporaries (rough)
    vmem_est = weight_bytes * (1 if single_buffer_weights else 2) \
        + act_bytes + tmp_bytes

    def const_spec(shape):
        # Weights/biases: same block every grid step -> stay VMEM-resident.
        if single_buffer_weights:
            return pl.BlockSpec(shape, lambda i: (0, 0),
                                pipeline_mode=pl.Buffered(1))
        return pl.BlockSpec(shape, lambda i: (0, 0))

    compiler_kwargs = dict(dimension_semantics=("parallel",))
    if vmem_est > (16 << 20):
        compiler_kwargs["vmem_limit_bytes"] = min(
            64 << 20, _round_up(2 * vmem_est, 1 << 20))

    out_p, state_p = pl.pallas_call(
        conba_kernel,
        out_shape=(
            jax.ShapeDtypeStruct((B, Dp), jnp.bfloat16),
            jax.ShapeDtypeStruct((B, Dp), jnp.bfloat16),
        ),
        grid=(nb,),
        in_specs=[
            row_spec,                     # x
            row_spec,                     # previous_state
            const_spec((Dp, Dp)),         # A^T
            const_spec((Dp, Dp)),         # B^T
            const_spec((Dp, Dp)),         # selective_fc^T
            const_spec((Dp, Dp)),         # C^T @ fc2^T
            const_spec((8, Dp)),          # packed per-feature vectors
        ],
        out_specs=(row_spec, row_spec),
        # previous_state buffer is donated to the new state (recurrent update).
        input_output_aliases={1: 1},
        compiler_params=pltpu.CompilerParams(**compiler_kwargs),
    )(xp, pp, prepped["w_a"], prepped["w_b"], prepped["w_sel"],
      prepped["w_cf"], prepped["vec"])

    output = out_p[:, :D].astype(x.dtype)
    if return_padded_state:
        state = state_p                      # (B, Dp) bf16, feed straight back
    else:
        state = state_p[:, :D].astype(x.dtype)
    return output, state


# ---------------------------------------------------------------------------
# Deterministic init (matches ConbaLayer.__init__ parameter shapes)
# ---------------------------------------------------------------------------
def init_params(key, input_dim):
    ks = jax.random.split(key, 10)
    dim = input_dim
    scale = 1.0 / jnp.sqrt(dim)

    def lin_w(k):
        return jax.random.uniform(k, (dim, dim), jnp.float32, -scale, scale)

    def lin_b(k):
        return jax.random.uniform(k, (dim,), jnp.float32, -scale, scale)

    return {
        # fc1 exists in __init__ but is unused in forward()
        "fc1_w": lin_w(ks[0]),
        "fc1_b": lin_b(ks[1]),
        "sel_w": lin_w(ks[2]),
        "sel_b": lin_b(ks[3]),
        "control_weight": jnp.ones((dim,), jnp.float32),
        "feedback_weight": jnp.ones((dim,), jnp.float32),
        "A_w": lin_w(ks[4]),
        "B_w": lin_w(ks[5]),
        "C_w": lin_w(ks[6]),
        "fc2_w": lin_w(ks[7]),
        "fc2_b": lin_b(ks[8]),
    }


def conba_reference(x, prev, p):
    """Pure-JAX f32 reference mirroring the PyTorch forward."""
    state = prev @ p["A_w"].T + x @ p["B_w"].T
    sel_pre = x @ p["sel_w"].T + p["sel_b"]
    selective = jax.nn.silu(sel_pre) * x
    adjusted = selective * p["control_weight"] + state * p["feedback_weight"]
    out = adjusted @ p["C_w"].T
    out = out @ p["fc2_w"].T + p["fc2_b"]
    return out, state


if __name__ == "__main__":
    key = jax.random.PRNGKey(0)
    k_param, k_x, _ = jax.random.split(key, 3)

    batch, input_dim = 8, 32
    params = init_params(k_param, input_dim)
    x = jax.random.normal(k_x, (batch, input_dim), jnp.float32)
    # previous_state=None in the PyTorch forward -> zeros_like(x)
    previous_state = jnp.zeros_like(x)

    prepped = prepare_params(params, input_dim)          # one-time host prep
    fwd = jax.jit(conba_layer)

    out, state = fwd(x, previous_state, prepped)
    out = jax.block_until_ready(out)
    state = jax.block_until_ready(state)

    ref_out, ref_state = conba_reference(x, previous_state, params)
    # bf16 weights/activations + pre-composed C∘fc2 -> bf16-level tolerance.
    assert jnp.allclose(out, ref_out, atol=5e-2, rtol=5e-2), "output mismatch"
    assert jnp.allclose(state, ref_state, atol=5e-2, rtol=5e-2), "state mismatch"

    print("KERNEL_OK")
</pallas_src>

<mosaic_0001>
module attributes {stable_mosaic.version = 11 : i64} {
  func.func @conba_kernel(%arg0: i32, %arg1: memref<8x128xbf16, #tpu.memory_space<vmem>>, %arg2: memref<8x128xbf16, #tpu.memory_space<vmem>>, %arg3: memref<128x128xbf16, #tpu.memory_space<vmem>>, %arg4: memref<128x128xbf16, #tpu.memory_space<vmem>>, %arg5: memref<128x128xbf16, #tpu.memory_space<vmem>>, %arg6: memref<128x128xbf16, #tpu.memory_space<vmem>>, %arg7: memref<8x128xf32, #tpu.memory_space<vmem>>, %arg8: memref<8x128xbf16, #tpu.memory_space<vmem>>, %arg9: memref<8x128xbf16, #tpu.memory_space<vmem>>) attributes {dimension_semantics = [#tpu.dimension_semantics<parallel>], iteration_bounds = array<i64: 1>, scalar_prefetch = 0 : i64, scratch_operands = 0 : i64, tpu.core_type = #tpu.core_type<tc>, window_params = [{transform_indices = @transform_0, window_bounds = array<i64: 8, 128>}, {transform_indices = @transform_1, window_bounds = array<i64: 8, 128>}, {pipeline_mode = #tpu.pipeline_mode<synchronous>, transform_indices = @transform_2, window_bounds = array<i64: 128, 128>}, {pipeline_mode = #tpu.pipeline_mode<synchronous>, transform_indices = @transform_3, window_bounds = array<i64: 128, 128>}, {pipeline_mode = #tpu.pipeline_mode<synchronous>, transform_indices = @transform_4, window_bounds = array<i64: 128, 128>}, {pipeline_mode = #tpu.pipeline_mode<synchronous>, transform_indices = @transform_5, window_bounds = array<i64: 128, 128>}, {pipeline_mode = #tpu.pipeline_mode<synchronous>, transform_indices = @transform_6, window_bounds = array<i64: 8, 128>}, {transform_indices = @transform_7, window_bounds = array<i64: 8, 128>}, {transform_indices = @transform_8, window_bounds = array<i64: 8, 128>}]} {
    %c0 = arith.constant 0 : index
    %c0_0 = arith.constant 0 : index
    %0 = vector.load %arg1[%c0, %c0_0] : memref<8x128xbf16, #tpu.memory_space<vmem>>, vector<8x128xbf16>
    %c0_1 = arith.constant 0 : index
    %c0_2 = arith.constant 0 : index
    %1 = vector.load %arg2[%c0_1, %c0_2] : memref<8x128xbf16, #tpu.memory_space<vmem>>, vector<8x128xbf16>
    %2 = arith.extf %0 : vector<8x128xbf16> to vector<8x128xf32>
    %c0_3 = arith.constant 0 : index
    %c0_4 = arith.constant 0 : index
    %3 = vector.load %arg7[%c0_3, %c0_4] : memref<8x128xf32, #tpu.memory_space<vmem>>, vector<8x128xf32>
    %4 = vector.extract_strided_slice %3 {offsets = [0, 0], sizes = [1, 128], strides = [1, 1]} : vector<8x128xf32> to vector<1x128xf32>
    %5 = vector.extract_strided_slice %3 {offsets = [1, 0], sizes = [1, 128], strides = [1, 1]} : vector<8x128xf32> to vector<1x128xf32>
    %6 = vector.extract_strided_slice %3 {offsets = [2, 0], sizes = [1, 128], strides = [1, 1]} : vector<8x128xf32> to vector<1x128xf32>
    %7 = vector.extract_strided_slice %3 {offsets = [3, 0], sizes = [1, 128], strides = [1, 1]} : vector<8x128xf32> to vector<1x128xf32>
    %c0_5 = arith.constant 0 : index
    %c0_6 = arith.constant 0 : index
    %8 = vector.load %arg3[%c0_5, %c0_6] : memref<128x128xbf16, #tpu.memory_space<vmem>>, vector<128x128xbf16>
    %cst = arith.constant dense<0.000000e+00> : vector<8x128xf32>
    %9 = tpu.matmul %1, %8, %cst {dimension_numbers = #tpu.dot_dimension_numbers<[1], [0], [0], [1], [0, 0, 1, 1], [], []>} : vector<8x128xbf16>, vector<128x128xbf16>, vector<8x128xf32> -> vector<8x128xf32>
    %c0_7 = arith.constant 0 : index
    %c0_8 = arith.constant 0 : index
    %10 = vector.load %arg4[%c0_7, %c0_8] : memref<128x128xbf16, #tpu.memory_space<vmem>>, vector<128x128xbf16>
    %cst_9 = arith.constant dense<0.000000e+00> : vector<8x128xf32>
    %11 = tpu.matmul %0, %10, %cst_9 {dimension_numbers = #tpu.dot_dimension_numbers<[1], [0], [0], [1], [0, 0, 1, 1], [], []>} : vector<8x128xbf16>, vector<128x128xbf16>, vector<8x128xf32> -> vector<8x128xf32>
    %12 = arith.addf %9, %11 : vector<8x128xf32>
    %c0_10 = arith.constant 0 : index
    %c0_11 = arith.constant 0 : index
    %13 = vector.load %arg5[%c0_10, %c0_11] : memref<128x128xbf16, #tpu.memory_space<vmem>>, vector<128x128xbf16>
    %cst_12 = arith.constant dense<0.000000e+00> : vector<8x128xf32>
    %14 = tpu.matmul %0, %13, %cst_12 {dimension_numbers = #tpu.dot_dimension_numbers<[1], [0], [0], [1], [0, 0, 1, 1], [], []>} : vector<8x128xbf16>, vector<128x128xbf16>, vector<8x128xf32> -> vector<8x128xf32>
    %15 = vector.broadcast %4 : vector<1x128xf32> to vector<8x128xf32>
    %16 = arith.addf %14, %15 : vector<8x128xf32>
    %cst_13 = arith.constant 5.000000e-01 : f32
    %17 = vector.broadcast %cst_13 : f32 to vector<8x128xf32>
    %18 = arith.mulf %17, %16 : vector<8x128xf32>
    %cst_14 = arith.constant 5.000000e-01 : f32
    %19 = vector.broadcast %cst_14 : f32 to vector<8x128xf32>
    %20 = arith.mulf %19, %16 : vector<8x128xf32>
    %21 = math.tanh %20 : vector<8x128xf32>
    %cst_15 = arith.constant 1.000000e+00 : f32
    %22 = vector.broadcast %cst_15 : f32 to vector<8x128xf32>
    %23 = arith.addf %22, %21 : vector<8x128xf32>
    %24 = arith.mulf %18, %23 : vector<8x128xf32>
    %25 = arith.mulf %24, %2 : vector<8x128xf32>
    %26 = vector.broadcast %5 : vector<1x128xf32> to vector<8x128xf32>
    %27 = arith.mulf %25, %26 : vector<8x128xf32>
    %28 = vector.broadcast %6 : vector<1x128xf32> to vector<8x128xf32>
    %29 = arith.mulf %12, %28 : vector<8x128xf32>
    %30 = arith.addf %27, %29 : vector<8x128xf32>
    %31 = arith.truncf %30 : vector<8x128xf32> to vector<8x128xbf16>
    %c0_16 = arith.constant 0 : index
    %c0_17 = arith.constant 0 : index
    %32 = vector.load %arg6[%c0_16, %c0_17] : memref<128x128xbf16, #tpu.memory_space<vmem>>, vector<128x128xbf16>
    %cst_18 = arith.constant dense<0.000000e+00> : vector<8x128xf32>
    %33 = tpu.matmul %31, %32, %cst_18 {dimension_numbers = #tpu.dot_dimension_numbers<[1], [0], [0], [1], [0, 0, 1, 1], [], []>} : vector<8x128xbf16>, vector<128x128xbf16>, vector<8x128xf32> -> vector<8x128xf32>
    %34 = vector.broadcast %7 : vector<1x128xf32> to vector<8x128xf32>
    %35 = arith.addf %33, %34 : vector<8x128xf32>
    %36 = arith.truncf %35 : vector<8x128xf32> to vector<8x128xbf16>
    %c0_19 = arith.constant 0 : index
    %c0_20 = arith.constant 0 : index
    %37 = vector.load %arg8[%c0_19, %c0_20] : memref<8x128xbf16, #tpu.memory_space<vmem>>, vector<8x128xbf16>
    tpu.vector_store %arg8[%c0_19, %c0_20], %36 {strides = array<i32>} : memref<8x128xbf16, #tpu.memory_space<vmem>>, vector<8x128xbf16>,
    %38 = arith.truncf %12 : vector<8x128xf32> to vector<8x128xbf16>
    %c0_21 = arith.constant 0 : index
    %c0_22 = arith.constant 0 : index
    %39 = vector.load %arg9[%c0_21, %c0_22] : memref<8x128xbf16, #tpu.memory_space<vmem>>, vector<8x128xbf16>
    tpu.vector_store %arg9[%c0_21, %c0_22], %38 {strides = array<i32>} : memref<8x128xbf16, #tpu.memory_space<vmem>>, vector<8x128xbf16>,
    return
  }
  func.func @transform_0(%arg0: i32) -> (i32, i32) {
    %c0_i32 = arith.constant 0 : i32
    %c0_i32_0 = arith.constant 0 : i32
    return %arg0, %c0_i32 : i32, i32
  }
  func.func @transform_1(%arg0: i32) -> (i32, i32) {
    %c0_i32 = arith.constant 0 : i32
    %c0_i32_0 = arith.constant 0 : i32
    return %arg0, %c0_i32 : i32, i32
  }
  func.func @transform_2(%arg0: i32) -> (i32, i32) {
    %c0_i32 = arith.constant 0 : i32
    %c0_i32_0 = arith.constant 0 : i32
    %c0_i32_1 = arith.constant 0 : i32
    return %c0_i32, %c0_i32_0 : i32, i32
  }
  func.func @transform_3(%arg0: i32) -> (i32, i32) {
    %c0_i32 = arith.constant 0 : i32
    %c0_i32_0 = arith.constant 0 : i32
    %c0_i32_1 = arith.constant 0 : i32
    return %c0_i32, %c0_i32_0 : i32, i32
  }
  func.func @transform_4(%arg0: i32) -> (i32, i32) {
    %c0_i32 = arith.constant 0 : i32
    %c0_i32_0 = arith.constant 0 : i32
    %c0_i32_1 = arith.constant 0 : i32
    return %c0_i32, %c0_i32_0 : i32, i32
  }
  func.func @transform_5(%arg0: i32) -> (i32, i32) {
    %c0_i32 = arith.constant 0 : i32
    %c0_i32_0 = arith.constant 0 : i32
    %c0_i32_1 = arith.constant 0 : i32
    return %c0_i32, %c0_i32_0 : i32, i32
  }
  func.func @transform_6(%arg0: i32) -> (i32, i32) {
    %c0_i32 = arith.constant 0 : i32
    %c0_i32_0 = arith.constant 0 : i32
    %c0_i32_1 = arith.constant 0 : i32
    return %c0_i32, %c0_i32_0 : i32, i32
  }
  func.func @transform_7(%arg0: i32) -> (i32, i32) {
    %c0_i32 = arith.constant 0 : i32
    %c0_i32_0 = arith.constant 0 : i32
    return %arg0, %c0_i32 : i32, i32
  }
  func.func @transform_8(%arg0: i32) -> (i32, i32) {
    %c0_i32 = arith.constant 0 : i32
    %c0_i32_0 = arith.constant 0 : i32
    return %arg0, %c0_i32 : i32, i32
  }
}

</mosaic_0001>

<llo_original>
// kernel: conba_layer.1
$region0: #{conba_layer.1}
  #allocation0 [shape = 'u32[]', space=smem, size = 0x4, offset = 0x4, fixed_abs, tag = 'smem constant byte address 0x4 - core index']
  #allocation1 [shape = 'u32[144,128]{1,0:T(1,128)}', space=vmem, size = 0x12000, scoped, tag = 'internal scratch']
  %s0 = inlined_call_operand.vmem [shape: bf16[8,128], index: 0, kind: input, shape index: {}]
  %s1 = inlined_call_operand.vmem [shape: bf16[8,128], index: 1, kind: input, shape index: {}, may-alias: {1,8}]
  %s2 = inlined_call_operand.hbm [shape: bf16[128,128], index: 2, kind: input, shape index: {}]
  %s3 = inlined_call_operand.hbm [shape: bf16[128,128], index: 3, kind: input, shape index: {}]
  %s4 = inlined_call_operand.vmem [shape: bf16[128,128], index: 4, kind: input, shape index: {}]
  %s5 = inlined_call_operand.hbm [shape: bf16[128,128], index: 5, kind: input, shape index: {}]
  %s6 = inlined_call_operand.hbm [shape: f32[8,128], index: 6, kind: input, shape index: {}]
  %s7 = inlined_call_operand.vmem [shape: bf16[8,128], index: 7, kind: output, shape index: {0}]
  %s8 = inlined_call_operand.vmem [shape: bf16[8,128], index: 8, kind: output, shape index: {1}, may-alias: {1,8}]
  %9 = xla_tuple %s7, %s8
  %s10 = sld [smem:[#allocation0]]
  $region62: #{conba_layer.1} parent=0
    _
  %s12 = ssub.s32 1, %s10
  %s13 = scalar_select 0, %s12, %s10
  $region1: #{conba_layer.1} parent=0
    #allocation2 [shape = 'u8[32768]{0}', space=vmem, size = 0x8000, scoped, tag = 'input window, operand 2, single buffered']
    #allocation3 [shape = 's32[1]{0}', space=sflag, size = 0x4, scoped, tag = 'scoped memory for conba_layer.1']
    #allocation4 [shape = 'u8[32768]{0}', space=vmem, size = 0x8000, scoped, tag = 'input window, operand 3, single buffered']
    #allocation5 [shape = 's32[1]{0}', space=sflag, size = 0x4, scoped, tag = 'scoped memory for conba_layer.1']
    #allocation6 [shape = 'u8[32768]{0}', space=vmem, size = 0x8000, scoped, tag = 'input window, operand 5, single buffered']
    #allocation7 [shape = 'u8[4096]{0}', space=vmem, size = 0x1000, scoped, tag = 'input window, operand 6, single buffered']
    #allocation8 [shape = 's32[1]{0}', space=sflag, size = 0x4, scoped, tag = 'scoped memory for conba_layer.1']
    %14 = vsyncpa [#allocation3], 0
    %15 = vsyncpa [#allocation5], 0
    %16 = vsyncpa [#allocation8], 0
    // Predicated region
    $region2: #{conba_layer.1} parent=1 // pred_check
      _
    $region3: #{conba_layer.1} parent=1 // pred_check_branch
      %18 = sbr.rel (0) target = $region5
    $region4: #{conba_layer.1} parent=1 // pred_region
      _
    $region5: #{conba_layer.1} parent=1 // pred_fallthru
      _
    // Predicated region
    $region6: #{conba_layer.1} parent=1 // pred_check
      _
    $region7: #{conba_layer.1} parent=1 // pred_check_branch
      %20 = sbr.rel (0) target = $region9
    $region8: #{conba_layer.1} parent=1 // pred_region
      _
    $region9: #{conba_layer.1} parent=1 // pred_fallthru
      _
    // Predicated region
    $region10: #{conba_layer.1} parent=1 // pred_check
      _
    $region11: #{conba_layer.1} parent=1 // pred_check_branch
      %22 = sbr.rel (0) target = $region13
    $region12: #{conba_layer.1} parent=1 // pred_region
      %s24 = ssub.s32 1024, 1024
      %25 = vsyncadd [#allocation3], %s24
      %s26 = sshll.u32 [#allocation2], 4
      %s27 = int_to_ptr.vmem [resolvable:$true] %s26
      %32 = dma.hbm_to_vmem [thread:$0]  %s2, 1024, %s27, [#allocation3], 64, 64, 4
    $region13: #{conba_layer.1} parent=1 // pred_fallthru
      _
    // Predicated region
    $region14: #{conba_layer.1} parent=1 // pred_check
      _
    $region15: #{conba_layer.1} parent=1 // pred_check_branch
      %34 = sbr.rel (0) target = $region17
    $region16: #{conba_layer.1} parent=1 // pred_region
      %s36 = ssub.s32 1024, 1024
      %37 = vsyncadd [#allocation5], %s36
      %s38 = sshll.u32 [#allocation4], 4
      %s39 = int_to_ptr.vmem [resolvable:$true] %s38
      %44 = dma.hbm_to_vmem [thread:$0]  %s3, 1024, %s39, [#allocation5], 64, 64, 4
    $region17: #{conba_layer.1} parent=1 // pred_fallthru
      _
    // Predicated region
    $region18: #{conba_layer.1} parent=1 // pred_check
      _
    $region19: #{conba_layer.1} parent=1 // pred_check_branch
      %46 = sbr.rel (0) target = $region21
    $region20: #{conba_layer.1} parent=1 // pred_region
      _
    $region21: #{conba_layer.1} parent=1 // pred_fallthru
      _
    // Predicated region
    $region22: #{conba_layer.1} parent=1 // pred_check
      _
    $region23: #{conba_layer.1} parent=1 // pred_check_branch
      %48 = sbr.rel (0) target = $region25
    $region24: #{conba_layer.1} parent=1 // pred_region
      %s50 = ssub.s32 1024, 1024
      %51 = vsyncadd [#allocation5], %s50
      %s52 = sshll.u32 [#allocation6], 4
      %s53 = int_to_ptr.vmem [resolvable:$true] %s52
      %58 = dma.hbm_to_vmem [thread:$0]  %s5, 1024, %s53, [#allocation5], 64, 64, 4
    $region25: #{conba_layer.1} parent=1 // pred_fallthru
      _
    // Predicated region
    $region26: #{conba_layer.1} parent=1 // pred_check
      _
    $region27: #{conba_layer.1} parent=1 // pred_check_branch
      %60 = sbr.rel (0) target = $region29
    $region28: #{conba_layer.1} parent=1 // pred_region
      %s62 = ssub.s32 128, 128
      %63 = vsyncadd [#allocation8], %s62
      %s65 = sshll.u32 [#allocation7], 4
      %s66 = int_to_ptr.vmem [resolvable:$true] %s65
      %68 = dma.hbm_to_vmem [thread:$0]  %s6, 128, %s66, [#allocation8]
    $region29: #{conba_layer.1} parent=1 // pred_fallthru
      _
    // Predicated region
    $region30: #{conba_layer.1} parent=1 // pred_check
      _
    $region31: #{conba_layer.1} parent=1 // pred_check_branch
      %70 = sbr.rel (0) target = $region33
    $region32: #{conba_layer.1} parent=1 // pred_region
      %71 = dma.done [#allocation3], 1024
    $region33: #{conba_layer.1} parent=1 // pred_fallthru
      _
    // Predicated region
    $region34: #{conba_layer.1} parent=1 // pred_check
      _
    $region35: #{conba_layer.1} parent=1 // pred_check_branch
      %73 = sbr.rel (0) target = $region37
    $region36: #{conba_layer.1} parent=1 // pred_region
      %74 = dma.done [#allocation5], 1024
    $region37: #{conba_layer.1} parent=1 // pred_fallthru
      _
    // Predicated region
    $region38: #{conba_layer.1} parent=1 // pred_check
      _
    $region39: #{conba_layer.1} parent=1 // pred_check_branch
      %76 = sbr.rel (0) target = $region41
    $region40: #{conba_layer.1} parent=1 // pred_region
      %77 = dma.done [#allocation5], 1024
    $region41: #{conba_layer.1} parent=1 // pred_fallthru
      _
    // Predicated region
    $region42: #{conba_layer.1} parent=1 // pred_check
      _
    $region43: #{conba_layer.1} parent=1 // pred_check_branch
      %79 = sbr.rel (0) target = $region45
    $region44: #{conba_layer.1} parent=1 // pred_region
      %80 = dma.done [#allocation8], 128
    $region45: #{conba_layer.1} parent=1 // pred_fallthru
      _
    %v82 = vld [vmem:[%s0] sm:$0xf]
    %v83 = vld [vmem:[%s1] sm:$0xf]
    %v84 = vunpack.c.l.bf16 %v82
    %v85 = vld [vmem:[#allocation7] sm:$0xff]
    %v86 = vld [vmem:[#allocation2] sm:$0xf]
    %v87 = vld [vmem:[#allocation2 + $0x4] sm:$0xf]
    %v88 = vld [vmem:[#allocation2 + $0x8] sm:$0xf]
    %v89 = vld [vmem:[#allocation2 + $0xc] sm:$0xf]
    %v90 = vld [vmem:[#allocation2 + $0x10] sm:$0xf]
    %v91 = vld [vmem:[#allocation2 + $0x14] sm:$0xf]
    %v92 = vld [vmem:[#allocation2 + $0x18] sm:$0xf]
    %v93 = vld [vmem:[#allocation2 + $0x1c] sm:$0xf]
    %v94 = vld [vmem:[#allocation2 + $0x20] sm:$0xf]
    %v95 = vld [vmem:[#allocation2 + $0x24] sm:$0xf]
    %v96 = vld [vmem:[#allocation2 + $0x28] sm:$0xf]
    %v97 = vld [vmem:[#allocation2 + $0x2c] sm:$0xf]
    %v98 = vld [vmem:[#allocation2 + $0x30] sm:$0xf]
    %v99 = vld [vmem:[#allocation2 + $0x34] sm:$0xf]
    %v100 = vld [vmem:[#allocation2 + $0x38] sm:$0xf]
    %v101 = vld [vmem:[#allocation2 + $0x3c] sm:$0xf]
    %v102 = vld [vmem:[#allocation4] sm:$0xf]
    %v103 = vld [vmem:[#allocation4 + $0x4] sm:$0xf]
    %v104 = vld [vmem:[#allocation4 + $0x8] sm:$0xf]
    %v105 = vld [vmem:[#allocation4 + $0xc] sm:$0xf]
    %v106 = vld [vmem:[#allocation4 + $0x10] sm:$0xf]
    %v107 = vld [vmem:[#allocation4 + $0x14] sm:$0xf]
    %v108 = vld [vmem:[#allocation4 + $0x18] sm:$0xf]
    %v109 = vld [vmem:[#allocation4 + $0x1c] sm:$0xf]
    %v110 = vld [vmem:[#allocation4 + $0x20] sm:$0xf]
    %v111 = vld [vmem:[#allocation4 + $0x24] sm:$0xf]
    %v112 = vld [vmem:[#allocation4 + $0x28] sm:$0xf]
    %v113 = vld [vmem:[#allocation4 + $0x2c] sm:$0xf]
    %v114 = vld [vmem:[#allocation4 + $0x30] sm:$0xf]
    %v115 = vld [vmem:[#allocation4 + $0x34] sm:$0xf]
    %v116 = vld [vmem:[#allocation4 + $0x38] sm:$0xf]
    %v117 = vld [vmem:[#allocation4 + $0x3c] sm:$0xf]
    %v134 = vunpack.c.l.b16 %v102
    %v135 = vunpack.c.l.b16 %v103
    %v136 = vunpack.c.l.b16 %v104
    %v137 = vunpack.c.l.b16 %v105
    %v138 = vunpack.c.l.b16 %v106
    %v139 = vunpack.c.l.b16 %v107
    %v140 = vunpack.c.l.b16 %v108
    %v141 = vunpack.c.l.b16 %v109
    %v142 = vunpack.c.l.b16 %v110
    %v143 = vunpack.c.l.b16 %v111
    %v144 = vunpack.c.l.b16 %v112
    %v145 = vunpack.c.l.b16 %v113
    %v146 = vunpack.c.l.b16 %v114
    %v147 = vunpack.c.l.b16 %v115
    %v148 = vunpack.c.l.b16 %v116
    %v149 = vunpack.c.l.b16 %v117
    %v150 = vpack.c.b16 %v135, %v134
    %v151 = vpack.c.b16 %v137, %v136
    %v152 = vpack.c.b16 %v139, %v138
    %v153 = vpack.c.b16 %v141, %v140
    %v154 = vpack.c.b16 %v143, %v142
    %v155 = vpack.c.b16 %v145, %v144
    %v156 = vpack.c.b16 %v147, %v146
    %v157 = vpack.c.b16 %v149, %v148
    %166 = vmatprep.subr.bf16.mxu0 0
    %167 = vmatpush1.bf16.msra.mxu0 %v150
    %168 = vmatprep.subr.bf16.mxu0 0
    %169 = vmatpush1.bf16.msra.mxu0 %v151
    %170 = vmatprep.subr.bf16.mxu0 0
    %171 = vmatpush1.bf16.msra.mxu0 %v152
    %172 = vmatprep.subr.bf16.mxu0 0
    %173 = vmatpush1.bf16.msra.mxu0 %v153
    %174 = vmatprep.subr.bf16.mxu0 0
    %175 = vmatpush1.bf16.msra.mxu0 %v154
    %176 = vmatprep.subr.bf16.mxu0 0
    %177 = vmatpush1.bf16.msra.mxu0 %v155
    %178 = vmatprep.subr.bf16.mxu0 0
    %179 = vmatpush1.bf16.msra.mxu0 %v156
    %180 = vmatprep.subr.bf16.mxu0 0
    %181 = vmatpush1.bf16.msra.mxu0 %v157
    %182 = vmatprep.subr.bf16.mxu0 0
    %183 = vmatpush1.bf16.msra.mxu0 0
    %184 = vmatprep.subr.bf16.mxu0 0
    %185 = vmatpush1.bf16.msra.mxu0 0
    %186 = vmatprep.subr.bf16.mxu0 0
    %187 = vmatpush1.bf16.msra.mxu0 0
    %188 = vmatprep.subr.bf16.mxu0 0
    %189 = vmatpush1.bf16.msra.mxu0 0
    %190 = vmatprep.subr.bf16.mxu0 0
    %191 = vmatpush1.bf16.msra.mxu0 0
    %192 = vmatprep.subr.bf16.mxu0 0
    %193 = vmatpush1.bf16.msra.mxu0 0
    %194 = vmatprep.subr.bf16.mxu0 0
    %195 = vmatpush1.bf16.msra.mxu0 0
    %196 = vmatprep.subr.bf16.mxu0 0
    %197 = vmatpush1.bf16.msra.mxu0 0
    %198 = vmatprep.mubr.bf16.mxu0 0
    %199 = vmatmul.mubr.bf16.gmra.mrb[0].mxu0 %v82
    %v200 = vpop.f32.mrb[0].mxu0
    %v201 = vadd.f32 0.0, %v200
    %v202 = vpop.f32.mrb[0].mxu0
    %v203 = vpop.f32.mrb[0].mxu0
    %v204 = vpop.f32.mrb[0].mxu0
    %205 = vdwg.mxu0
    %v222 = vunpack.c.l.b16 %v86
    %v223 = vunpack.c.l.b16 %v87
    %v224 = vunpack.c.l.b16 %v88
    %v225 = vunpack.c.l.b16 %v89
    %v226 = vunpack.c.l.b16 %v90
    %v227 = vunpack.c.l.b16 %v91
    %v228 = vunpack.c.l.b16 %v92
    %v229 = vunpack.c.l.b16 %v93
    %v230 = vunpack.c.l.b16 %v94
    %v231 = vunpack.c.l.b16 %v95
    %v232 = vunpack.c.l.b16 %v96
    %v233 = vunpack.c.l.b16 %v97
    %v234 = vunpack.c.l.b16 %v98
    %v235 = vunpack.c.l.b16 %v99
    %v236 = vunpack.c.l.b16 %v100
    %v237 = vunpack.c.l.b16 %v101
    %v238 = vpack.c.b16 %v223, %v222
    %v239 = vpack.c.b16 %v225, %v224
    %v240 = vpack.c.b16 %v227, %v226
    %v241 = vpack.c.b16 %v229, %v228
    %v242 = vpack.c.b16 %v231, %v230
    %v243 = vpack.c.b16 %v233, %v232
    %v244 = vpack.c.b16 %v235, %v234
    %v245 = vpack.c.b16 %v237, %v236
    %254 = vmatprep.subr.bf16.mxu0 0
    %255 = vmatpush1.bf16.msra.mxu0 %v238
    %256 = vmatprep.subr.bf16.mxu0 0
    %257 = vmatpush1.bf16.msra.mxu0 %v239
    %258 = vmatprep.subr.bf16.mxu0 0
    %259 = vmatpush1.bf16.msra.mxu0 %v240
    %260 = vmatprep.subr.bf16.mxu0 0
    %261 = vmatpush1.bf16.msra.mxu0 %v241
    %262 = vmatprep.subr.bf16.mxu0 0
    %263 = vmatpush1.bf16.msra.mxu0 %v242
    %264 = vmatprep.subr.bf16.mxu0 0
    %265 = vmatpush1.bf16.msra.mxu0 %v243
    %266 = vmatprep.subr.bf16.mxu0 0
    %267 = vmatpush1.bf16.msra.mxu0 %v244
    %268 = vmatprep.subr.bf16.mxu0 0
    %269 = vmatpush1.bf16.msra.mxu0 %v245
    %270 = vmatprep.subr.bf16.mxu0 0
    %271 = vmatpush1.bf16.msra.mxu0 0
    %272 = vmatprep.subr.bf16.mxu0 0
    %273 = vmatpush1.bf16.msra.mxu0 0
    %274 = vmatprep.subr.bf16.mxu0 0
    %275 = vmatpush1.bf16.msra.mxu0 0
    %276 = vmatprep.subr.bf16.mxu0 0
    %277 = vmatpush1.bf16.msra.mxu0 0
    %278 = vmatprep.subr.bf16.mxu0 0
    %279 = vmatpush1.bf16.msra.mxu0 0
    %280 = vmatprep.subr.bf16.mxu0 0
    %281 = vmatpush1.bf16.msra.mxu0 0
    %282 = vmatprep.subr.bf16.mxu0 0
    %283 = vmatpush1.bf16.msra.mxu0 0
    %284 = vmatprep.subr.bf16.mxu0 0
    %285 = vmatpush1.bf16.msra.mxu0 0
    %286 = vmatprep.mubr.bf16.mxu0 0
    %287 = vmatmul.mubr.bf16.gmra.mrb[0].mxu0 %v83
    %v288 = vpop.f32.mrb[0].mxu0
    %v289 = vadd.f32 %v201, %v288
    %v290 = vpop.f32.mrb[0].mxu0
    %v291 = vpop.f32.mrb[0].mxu0
    %v292 = vpop.f32.mrb[0].mxu0
    %293 = vdwg.mxu0
    %v294 = vld [vmem:[%s4] sm:$0xf]
    %v295 = vld [vmem:[%s4 + $0x4] sm:$0xf]
    %v296 = vld [vmem:[%s4 + $0x8] sm:$0xf]
    %v297 = vld [vmem:[%s4 + $0xc] sm:$0xf]
    %v298 = vld [vmem:[%s4 + $0x10] sm:$0xf]
    %v299 = vld [vmem:[%s4 + $0x14] sm:$0xf]
    %v300 = vld [vmem:[%s4 + $0x18] sm:$0xf]
    %v301 = vld [vmem:[%s4 + $0x1c] sm:$0xf]
    %v302 = vld [vmem:[%s4 + $0x20] sm:$0xf]
    %v303 = vld [vmem:[%s4 + $0x24] sm:$0xf]
    %v304 = vld [vmem:[%s4 + $0x28] sm:$0xf]
    %v305 = vld [vmem:[%s4 + $0x2c] sm:$0xf]
    %v306 = vld [vmem:[%s4 + $0x30] sm:$0xf]
    %v307 = vld [vmem:[%s4 + $0x34] sm:$0xf]
    %v308 = vld [vmem:[%s4 + $0x38] sm:$0xf]
    %v309 = vld [vmem:[%s4 + $0x3c] sm:$0xf]
    %v310 = vlaneseq
    %v311 = vshrl.u32 %v310, 7
    %v312 = vsub.s32 0, %v311
    %v313 = vrot.slane %v85, %v312
    %v330 = vunpack.c.l.b16 %v294
    %v331 = vunpack.c.l.b16 %v295
    %v332 = vunpack.c.l.b16 %v296
    %v333 = vunpack.c.l.b16 %v297
    %v334 = vunpack.c.l.b16 %v298
    %v335 = vunpack.c.l.b16 %v299
    %v336 = vunpack.c.l.b16 %v300
    %v337 = vunpack.c.l.b16 %v301
    %v338 = vunpack.c.l.b16 %v302
    %v339 = vunpack.c.l.b16 %v303
    %v340 = vunpack.c.l.b16 %v304
    %v341 = vunpack.c.l.b16 %v305
    %v342 = vunpack.c.l.b16 %v306
    %v343 = vunpack.c.l.b16 %v307
    %v344 = vunpack.c.l.b16 %v308
    %v345 = vunpack.c.l.b16 %v309
    %v346 = vpack.c.b16 %v331, %v330
    %v347 = vpack.c.b16 %v333, %v332
    %v348 = vpack.c.b16 %v335, %v334
    %v349 = vpack.c.b16 %v337, %v336
    %v350 = vpack.c.b16 %v339, %v338
    %v351 = vpack.c.b16 %v341, %v340
    %v352 = vpack.c.b16 %v343, %v342
    %v353 = vpack.c.b16 %v345, %v344
    %362 = vmatprep.subr.bf16.mxu0 0
    %363 = vmatpush1.bf16.msra.mxu0 %v346
    %364 = vmatprep.subr.bf16.mxu0 0
    %365 = vmatpush1.bf16.msra.mxu0 %v347
    %366 = vmatprep.subr.bf16.mxu0 0
    %367 = vmatpush1.bf16.msra.mxu0 %v348
    %368 = vmatprep.subr.bf16.mxu0 0
    %369 = vmatpush1.bf16.msra.mxu0 %v349
    %370 = vmatprep.subr.bf16.mxu0 0
    %371 = vmatpush1.bf16.msra.mxu0 %v350
    %372 = vmatprep.subr.bf16.mxu0 0
    %373 = vmatpush1.bf16.msra.mxu0 %v351
    %374 = vmatprep.subr.bf16.mxu0 0
    %375 = vmatpush1.bf16.msra.mxu0 %v352
    %376 = vmatprep.subr.bf16.mxu0 0
    %377 = vmatpush1.bf16.msra.mxu0 %v353
    %378 = vmatprep.subr.bf16.mxu0 0
    %379 = vmatpush1.bf16.msra.mxu0 0
    %380 = vmatprep.subr.bf16.mxu0 0
    %381 = vmatpush1.bf16.msra.mxu0 0
    %382 = vmatprep.subr.bf16.mxu0 0
    %383 = vmatpush1.bf16.msra.mxu0 0
    %384 = vmatprep.subr.bf16.mxu0 0
    %385 = vmatpush1.bf16.msra.mxu0 0
    %386 = vmatprep.subr.bf16.mxu0 0
    %387 = vmatpush1.bf16.msra.mxu0 0
    %388 = vmatprep.subr.bf16.mxu0 0
    %389 = vmatpush1.bf16.msra.mxu0 0
    %390 = vmatprep.subr.bf16.mxu0 0
    %391 = vmatpush1.bf16.msra.mxu0 0
    %392 = vmatprep.subr.bf16.mxu0 0
    %393 = vmatpush1.bf16.msra.mxu0 0
    %394 = vmatprep.mubr.bf16.mxu0 0
    %395 = vmatmul.mubr.bf16.gmra.mrb[0].mxu0 %v82
    %v396 = vpop.f32.mrb[0].mxu0
    %v397 = vadd.f32 %v313, %v396
    %v398 = vpop.f32.mrb[0].mxu0
    %v399 = vpop.f32.mrb[0].mxu0
    %v400 = vpop.f32.mrb[0].mxu0
    %401 = vdwg.mxu0
    %v402 = vmul.f32 %v397, 0.5
    %v403 = vtanh.pop %v402
    %v404 = vadd.f32 %v403, 1.0
    %v405 = vmul.f32 %v402, %v404
    %v406 = vmul.f32 %v405, %v84
    %v407 = vlaneseq
    %v408 = vshrl.u32 %v407, 7
    %v409 = vsub.s32 1, %v408
    %v410 = vrot.slane %v85, %v409
    %v411 = vmul.f32 %v406, %v410
    %v412 = vlaneseq
    %v413 = vshrl.u32 %v412, 7
    %v414 = vsub.s32 2, %v413
    %v415 = vrot.slane %v85, %v414
    %v416 = vmul.f32 %v289, %v415
    %v417 = vadd.f32 %v411, %v416
    %v418 = vpack.c.bf16 %v417, %v417
    %v419 = vld [vmem:[#allocation6] sm:$0xf]
    %v420 = vld [vmem:[#allocation6 + $0x4] sm:$0xf]
    %v421 = vld [vmem:[#allocation6 + $0x8] sm:$0xf]
    %v422 = vld [vmem:[#allocation6 + $0xc] sm:$0xf]
    %v423 = vld [vmem:[#allocation6 + $0x10] sm:$0xf]
    %v424 = vld [vmem:[#allocation6 + $0x14] sm:$0xf]
    %v425 = vld [vmem:[#allocation6 + $0x18] sm:$0xf]
    %v426 = vld [vmem:[#allocation6 + $0x1c] sm:$0xf]
    %v427 = vld [vmem:[#allocation6 + $0x20] sm:$0xf]
    %v428 = vld [vmem:[#allocation6 + $0x24] sm:$0xf]
    %v429 = vld [vmem:[#allocation6 + $0x28] sm:$0xf]
    %v430 = vld [vmem:[#allocation6 + $0x2c] sm:$0xf]
    %v431 = vld [vmem:[#allocation6 + $0x30] sm:$0xf]
    %v432 = vld [vmem:[#allocation6 + $0x34] sm:$0xf]
    %v433 = vld [vmem:[#allocation6 + $0x38] sm:$0xf]
    %v434 = vld [vmem:[#allocation6 + $0x3c] sm:$0xf]
    %v435 = vlaneseq
    %v436 = vshrl.u32 %v435, 7
    %v437 = vsub.s32 3, %v436
    %v438 = vrot.slane %v85, %v437
    %v455 = vunpack.c.l.b16 %v419
    %v456 = vunpack.c.l.b16 %v420
    %v457 = vunpack.c.l.b16 %v421
    %v458 = vunpack.c.l.b16 %v422
    %v459 = vunpack.c.l.b16 %v423
    %v460 = vunpack.c.l.b16 %v424
    %v461 = vunpack.c.l.b16 %v425
    %v462 = vunpack.c.l.b16 %v426
    %v463 = vunpack.c.l.b16 %v427
    %v464 = vunpack.c.l.b16 %v428
    %v465 = vunpack.c.l.b16 %v429
    %v466 = vunpack.c.l.b16 %v430
    %v467 = vunpack.c.l.b16 %v431
    %v468 = vunpack.c.l.b16 %v432
    %v469 = vunpack.c.l.b16 %v433
    %v470 = vunpack.c.l.b16 %v434
    %v471 = vpack.c.b16 %v456, %v455
    %v472 = vpack.c.b16 %v458, %v457
    %v473 = vpack.c.b16 %v460, %v459
    %v474 = vpack.c.b16 %v462, %v461
    %v475 = vpack.c.b16 %v464, %v463
    %v476 = vpack.c.b16 %v466, %v465
    %v477 = vpack.c.b16 %v468, %v467
    %v478 = vpack.c.b16 %v470, %v469
    %487 = vmatprep.subr.bf16.mxu0 0
    %488 = vmatpush1.bf16.msra.mxu0 %v471
    %489 = vmatprep.subr.bf16.mxu0 0
    %490 = vmatpush1.bf16.msra.mxu0 %v472
    %491 = vmatprep.subr.bf16.mxu0 0
    %492 = vmatpush1.bf16.msra.mxu0 %v473
    %493 = vmatprep.subr.bf16.mxu0 0
    %494 = vmatpush1.bf16.msra.mxu0 %v474
    %495 = vmatprep.subr.bf16.mxu0 0
    %496 = vmatpush1.bf16.msra.mxu0 %v475
    %497 = vmatprep.subr.bf16.mxu0 0
    %498 = vmatpush1.bf16.msra.mxu0 %v476
    %499 = vmatprep.subr.bf16.mxu0 0
    %500 = vmatpush1.bf16.msra.mxu0 %v477
    %501 = vmatprep.subr.bf16.mxu0 0
    %502 = vmatpush1.bf16.msra.mxu0 %v478
    %503 = vmatprep.subr.bf16.mxu0 0
    %504 = vmatpush1.bf16.msra.mxu0 0
    %505 = vmatprep.subr.bf16.mxu0 0
    %506 = vmatpush1.bf16.msra.mxu0 0
    %507 = vmatprep.subr.bf16.mxu0 0
    %508 = vmatpush1.bf16.msra.mxu0 0
    %509 = vmatprep.subr.bf16.mxu0 0
    %510 = vmatpush1.bf16.msra.mxu0 0
    %511 = vmatprep.subr.bf16.mxu0 0
    %512 = vmatpush1.bf16.msra.mxu0 0
    %513 = vmatprep.subr.bf16.mxu0 0
    %514 = vmatpush1.bf16.msra.mxu0 0
    %515 = vmatprep.subr.bf16.mxu0 0
    %516 = vmatpush1.bf16.msra.mxu0 0
    %517 = vmatprep.subr.bf16.mxu0 0
    %518 = vmatpush1.bf16.msra.mxu0 0
    %519 = vmatprep.mubr.bf16.mxu0 0
    %520 = vmatmul.mubr.bf16.gmra.mrb[0].mxu0 %v418
    %v521 = vpop.f32.mrb[0].mxu0
    %v522 = vadd.f32 %v438, %v521
    %v523 = vpop.f32.mrb[0].mxu0
    %v524 = vpop.f32.mrb[0].mxu0
    %v525 = vpop.f32.mrb[0].mxu0
    %526 = vdwg.mxu0
    %v527 = vpack.c.bf16 %v522, %v522
    %528 = vst [vmem:[%s7] sm:$0xf] %v527
    %v529 = vpack.c.bf16 %v289, %v289
    %530 = vst [vmem:[%s8] sm:$0xf] %v529
    // Predicated region
    $region46: #{conba_layer.1} parent=1 // pred_check
      _
    $region47: #{conba_layer.1} parent=1 // pred_check_branch
      %532 = sbr.rel (0) target = $region49
    $region48: #{conba_layer.1} parent=1 // pred_region
      _
    $region49: #{conba_layer.1} parent=1 // pred_fallthru
      _
    // Predicated region
    $region50: #{conba_layer.1} parent=1 // pred_check
      _
    $region51: #{conba_layer.1} parent=1 // pred_check_branch
      %534 = sbr.rel (0) target = $region53
    $region52: #{conba_layer.1} parent=1 // pred_region
      _
    $region53: #{conba_layer.1} parent=1 // pred_fallthru
      _
    // Predicated region
    $region54: #{conba_layer.1} parent=1 // pred_check
      _
    $region55: #{conba_layer.1} parent=1 // pred_check_branch
      %536 = sbr.rel (0) target = $region57
    $region56: #{conba_layer.1} parent=1 // pred_region
      _
    $region57: #{conba_layer.1} parent=1 // pred_fallthru
      _
    // Predicated region
    $region58: #{conba_layer.1} parent=1 // pred_check
      _
    $region59: #{conba_layer.1} parent=1 // pred_check_branch
      %538 = sbr.rel (0) target = $region61
    $region60: #{conba_layer.1} parent=1 // pred_region
      _
    $region61: #{conba_layer.1} parent=1 // pred_fallthru
      _
    %539 = vsyncpa [#allocation3], 1
    %540 = vsyncpa [#allocation5], 1
    %541 = vsyncpa [#allocation8], 1

</llo_original>
